<compile_context>
chip_gen: v6e
topology: v6e:2x2x1
jax: 0.10.0
libtpu: 0.0.40
codegen_flags: <defaults>
</compile_context>

<pallas_src>
import jax
import jax.numpy as jnp
from jax.experimental import pallas as pl
from jax.experimental.pallas import tpu as pltpu


def _round_up(x, m):
    return ((x + m - 1) // m) * m


def _num_tensorcores():
    """Best-effort TensorCore-per-chip count (v7x = 2). Falls back to 1."""
    try:
        info = pltpu.get_tpu_info()
        for attr in ("num_cores", "cores_per_chip", "num_tensorcores"):
            v = getattr(info, attr, None)
            if v:
                return max(1, int(v))
    except Exception:
        pass
    try:
        return max(1, int(getattr(jax.devices()[0], "num_cores", 1)))
    except Exception:
        return 1


def _head_kernel(x_ref, w1_ref, b1_ref, w2_ref, b2_ref, out_ref):
    # x_ref:  (TN, dim_in)      tile of masked node features
    # w1_ref: (dim_in, dh)      b1_ref: (1, dh)
    # w2_ref: (dh, dim_out)     b2_ref: (1, dim_out)
    # out_ref:(TN, dim_out)     per-row softmax probabilities
    x = x_ref[...]
    h = jnp.dot(x, w1_ref[...], preferred_element_type=jnp.float32) + b1_ref[...]
    h = jnp.maximum(h, 0.0)                                   # ReLU between MLP layers
    o = jnp.dot(h, w2_ref[...], preferred_element_type=jnp.float32) + b2_ref[...]
    # numerically-stable row softmax
    m = jnp.max(o, axis=-1, keepdims=True)
    e = jnp.exp(o - m)
    s = jnp.sum(e, axis=-1, keepdims=True)
    r = pl.reciprocal(s, approx=True)                         # EUP vrcp (free slot)
    r = r * (2.0 - s * r)                                     # Newton step -> fp32 acc
    out_ref[...] = (e * r).astype(out_ref.dtype)


def _pick_tile_n(m_rows, dim_in, dh, dim_out,
                 *, vmem_budget_bytes=12 << 20, max_tile=4096):
    """Row tile from a VMEM budget: double-buffered x/out tiles plus in-kernel
    f32 intermediates (h, o/e), leaving headroom under the 16/32 MiB scoped
    VMEM defaults.  Then cap to the data size and (for multi-TC chips) adjust
    so the grid-step count splits evenly across TensorCores."""
    per_row = 4 * (2 * dim_in + 2 * dim_out + dh + 2 * dim_out)   # x(x2)+out(x2)+h+o+e
    fixed = 8 * (dim_in * dh + dh + dh * dim_out + dim_out)       # weights, double-buffered
    tn = (vmem_budget_bytes - fixed) // max(per_row, 1)
    tn = max(8, min(max_tile, (tn // 8) * 8))
    tn = min(tn, _round_up(m_rows, 8))            # don't tile past the data

    nc = _num_tensorcores()
    steps = pl.cdiv(m_rows, tn)
    if nc > 1 and steps > 1 and steps % nc != 0:
        steps = _round_up(steps, nc)
        tn = max(8, _round_up(pl.cdiv(m_rows, steps), 8))
    return int(tn)


def node_head_forward(x_rows, params, *, tile_n=None):
    """MLP (Linear->ReLU->Linear) + row softmax on the given rows, fused in one
    Pallas kernel.  Returns probs of shape (num_rows, dim_out), float32."""
    m_rows, dim_in = x_rows.shape
    dh = params["w1"].shape[1]
    dim_out = params["w2"].shape[1]

    if tile_n is None:
        tn = _pick_tile_n(m_rows, dim_in, dh, dim_out)
    else:
        tn = max(8, (int(tile_n) // 8) * 8)
        tn = min(tn, _round_up(m_rows, 8))

    grid = (pl.cdiv(m_rows, tn),)

    cost = pl.CostEstimate(
        flops=int(2 * m_rows * (dim_in * dh + dh * dim_out)),
        transcendentals=int(m_rows * dim_out),
        bytes_accessed=int(4 * (m_rows * dim_in + m_rows * dim_out
                                + dim_in * dh + dh + dh * dim_out + dim_out)),
    )

    kernel = pl.pallas_call(
        _head_kernel,
        out_shape=jax.ShapeDtypeStruct((m_rows, dim_out), jnp.float32),
        grid_spec=pltpu.PrefetchScalarGridSpec(
            num_scalar_prefetch=0,
            grid=grid,
            in_specs=[
                pl.BlockSpec((tn, dim_in), lambda i: (i, 0)),    # x tile (streamed)
                pl.BlockSpec((dim_in, dh), lambda i: (0, 0)),    # w1 (resident)
                pl.BlockSpec((1, dh), lambda i: (0, 0)),         # b1
                pl.BlockSpec((dh, dim_out), lambda i: (0, 0)),   # w2 (resident)
                pl.BlockSpec((1, dim_out), lambda i: (0, 0)),    # b2
            ],
            out_specs=pl.BlockSpec((tn, dim_out), lambda i: (i, 0)),  # compact store
        ),
        compiler_params=pltpu.CompilerParams(
            dimension_semantics=("parallel",),
        ),
        cost_estimate=cost,
    )
    return kernel(x_rows, params["w1"], params["b1"], params["w2"], params["b2"])


def custom_node_head(x, y, mask_idx, params, *, tile_n=None):
    """Full CustomNodeHead.forward: (pred, label).

    mask_idx: integer indices of nodes where batch['{split}_mask'] is True.
    The boolean-mask -> index conversion and the row/label gathers stay in JAX
    glue (dynamic output shape); only masked rows enter the kernel, which is
    valid because row softmax commutes with row selection.
    """
    dim_out = params["w2"].shape[1]
    label = y[mask_idx]
    if mask_idx.shape[0] == 0:
        return jnp.zeros((0, dim_out), jnp.float32), label
    x_masked = x[mask_idx]
    pred = node_head_forward(x_masked, params, tile_n=tile_n)
    return pred, label


def init_params(key, dim_in, dim_hidden, dim_out):
    """Deterministic PyTorch-style (uniform +-1/sqrt(fan_in)) init."""
    k1, k2, k3, k4 = jax.random.split(key, 4)
    lim1 = 1.0 / jnp.sqrt(dim_in)
    lim2 = 1.0 / jnp.sqrt(dim_hidden)
    return {
        "w1": jax.random.uniform(k1, (dim_in, dim_hidden), jnp.float32, -lim1, lim1),
        "b1": jax.random.uniform(k2, (1, dim_hidden), jnp.float32, -lim1, lim1),
        "w2": jax.random.uniform(k3, (dim_hidden, dim_out), jnp.float32, -lim2, lim2),
        "b2": jax.random.uniform(k4, (1, dim_out), jnp.float32, -lim2, lim2),
    }


if __name__ == "__main__":
    # small synthetic "graph batch": N nodes, dim_in features, dim_out classes
    N, DIM_IN, DIM_HIDDEN, DIM_OUT = 64, 32, 32, 8

    key = jax.random.PRNGKey(0)
    kx, ky, kp = jax.random.split(key, 3)

    x = jax.random.normal(kx, (N, DIM_IN), dtype=jnp.float32)
    y = jax.random.randint(ky, (N,), 0, DIM_OUT, dtype=jnp.int32)
    params = init_params(kp, DIM_IN, DIM_HIDDEN, DIM_OUT)

    # deterministic split mask: every other node is in the 'train' split
    mask = (jnp.arange(N) % 2) == 0
    mask_idx = jnp.arange(0, N, 2)

    pred, label = custom_node_head(x, y, mask_idx, params)
    pred = jax.block_until_ready(pred)
    label = jax.block_until_ready(label)

    # reference check in plain JAX
    h_ref = jnp.maximum(x @ params["w1"] + params["b1"], 0.0)
    out_ref = h_ref @ params["w2"] + params["b2"]
    pred_ref = jax.nn.softmax(out_ref[mask], axis=1)
    label_ref = y[mask]

    assert pred.shape == (N // 2, DIM_OUT) and label.shape == (N // 2,)
    assert jnp.allclose(pred, pred_ref, atol=1e-5, rtol=1e-5)
    assert jnp.array_equal(label, label_ref)
    assert jnp.allclose(jnp.sum(pred, axis=1), 1.0, atol=1e-5)

    print("KERNEL_OK")
</pallas_src>

<mosaic_0001>
module attributes {stable_mosaic.version = 11 : i64} {
  func.func @_head_kernel(%arg0: i32, %arg1: memref<32x32xf32, #tpu.memory_space<vmem>>, %arg2: memref<32x32xf32, #tpu.memory_space<vmem>>, %arg3: memref<1x32xf32, #tpu.memory_space<vmem>>, %arg4: memref<32x8xf32, #tpu.memory_space<vmem>>, %arg5: memref<1x8xf32, #tpu.memory_space<vmem>>, %arg6: memref<32x8xf32, #tpu.memory_space<vmem>>) attributes {dimension_semantics = [#tpu.dimension_semantics<parallel>], iteration_bounds = array<i64: 1>, scalar_prefetch = 0 : i64, scratch_operands = 0 : i64, tpu.core_type = #tpu.core_type<tc>, window_params = [{transform_indices = @transform_0, window_bounds = array<i64: 32, 32>}, {pipeline_mode = #tpu.pipeline_mode<synchronous>, transform_indices = @transform_1, window_bounds = array<i64: 32, 32>}, {pipeline_mode = #tpu.pipeline_mode<synchronous>, transform_indices = @transform_2, window_bounds = array<i64: 1, 32>}, {pipeline_mode = #tpu.pipeline_mode<synchronous>, transform_indices = @transform_3, window_bounds = array<i64: 32, 8>}, {pipeline_mode = #tpu.pipeline_mode<synchronous>, transform_indices = @transform_4, window_bounds = array<i64: 1, 8>}, {transform_indices = @transform_5, window_bounds = array<i64: 32, 8>}]} {
    %c0 = arith.constant 0 : index
    %c0_0 = arith.constant 0 : index
    %0 = vector.load %arg1[%c0, %c0_0] : memref<32x32xf32, #tpu.memory_space<vmem>>, vector<32x32xf32>
    %c0_1 = arith.constant 0 : index
    %c0_2 = arith.constant 0 : index
    %1 = vector.load %arg2[%c0_1, %c0_2] : memref<32x32xf32, #tpu.memory_space<vmem>>, vector<32x32xf32>
    %cst = arith.constant dense<0.000000e+00> : vector<32x32xf32>
    %2 = tpu.matmul %0, %1, %cst {dimension_numbers = #tpu.dot_dimension_numbers<[1], [0], [0], [1], [0, 0, 1, 1], [], []>} : vector<32x32xf32>, vector<32x32xf32>, vector<32x32xf32> -> vector<32x32xf32>
    %c0_3 = arith.constant 0 : index
    %c0_4 = arith.constant 0 : index
    %3 = vector.load %arg3[%c0_3, %c0_4] : memref<1x32xf32, #tpu.memory_space<vmem>>, vector<1x32xf32>
    %4 = vector.broadcast %3 : vector<1x32xf32> to vector<32x32xf32>
    %5 = arith.addf %2, %4 : vector<32x32xf32>
    %cst_5 = arith.constant 0.000000e+00 : f32
    %6 = vector.broadcast %cst_5 : f32 to vector<32x32xf32>
    %7 = arith.maximumf %5, %6 : vector<32x32xf32>
    %c0_6 = arith.constant 0 : index
    %c0_7 = arith.constant 0 : index
    %8 = vector.load %arg4[%c0_6, %c0_7] : memref<32x8xf32, #tpu.memory_space<vmem>>, vector<32x8xf32>
    %cst_8 = arith.constant dense<0.000000e+00> : vector<32x8xf32>
    %9 = tpu.matmul %7, %8, %cst_8 {dimension_numbers = #tpu.dot_dimension_numbers<[1], [0], [0], [1], [0, 0, 1, 1], [], []>} : vector<32x32xf32>, vector<32x8xf32>, vector<32x8xf32> -> vector<32x8xf32>
    %c0_9 = arith.constant 0 : index
    %c0_10 = arith.constant 0 : index
    %10 = vector.load %arg5[%c0_9, %c0_10] : memref<1x8xf32, #tpu.memory_space<vmem>>, vector<1x8xf32>
    %11 = vector.broadcast %10 : vector<1x8xf32> to vector<32x8xf32>
    %12 = arith.addf %9, %11 : vector<32x8xf32>
    %cst_11 = arith.constant dense<0xFF800000> : vector<32xf32>
    %13 = vector.multi_reduction <maximumf>, %12, %cst_11 [1] : vector<32x8xf32> to vector<32xf32>
    %14 = vector.shape_cast %13 : vector<32xf32> to vector<32x1xf32>
    %15 = vector.broadcast %14 : vector<32x1xf32> to vector<32x8xf32>
    %16 = arith.subf %12, %15 : vector<32x8xf32>
    %17 = math.exp %16 : vector<32x8xf32>
    %cst_12 = arith.constant dense<0.000000e+00> : vector<32xf32>
    %18 = vector.multi_reduction <add>, %17, %cst_12 [1] : vector<32x8xf32> to vector<32xf32>
    %19 = vector.shape_cast %18 : vector<32xf32> to vector<32x1xf32>
    %20 = tpu.reciprocal %19 {approx = true} : vector<32x1xf32> -> vector<32x1xf32>
    %21 = arith.mulf %19, %20 : vector<32x1xf32>
    %cst_13 = arith.constant 2.000000e+00 : f32
    %22 = vector.broadcast %cst_13 : f32 to vector<32x1xf32>
    %23 = arith.subf %22, %21 : vector<32x1xf32>
    %24 = arith.mulf %20, %23 : vector<32x1xf32>
    %25 = vector.broadcast %24 : vector<32x1xf32> to vector<32x8xf32>
    %26 = arith.mulf %17, %25 : vector<32x8xf32>
    %c0_14 = arith.constant 0 : index
    %c0_15 = arith.constant 0 : index
    %27 = vector.load %arg6[%c0_14, %c0_15] : memref<32x8xf32, #tpu.memory_space<vmem>>, vector<32x8xf32>
    tpu.vector_store %arg6[%c0_14, %c0_15], %26 {strides = array<i32>} : memref<32x8xf32, #tpu.memory_space<vmem>>, vector<32x8xf32>,
    return
  }
  func.func @transform_0(%arg0: i32) -> (i32, i32) {
    %c0_i32 = arith.constant 0 : i32
    %c0_i32_0 = arith.constant 0 : i32
    return %arg0, %c0_i32 : i32, i32
  }
  func.func @transform_1(%arg0: i32) -> (i32, i32) {
    %c0_i32 = arith.constant 0 : i32
    %c0_i32_0 = arith.constant 0 : i32
    %c0_i32_1 = arith.constant 0 : i32
    return %c0_i32, %c0_i32_0 : i32, i32
  }
  func.func @transform_2(%arg0: i32) -> (i32, i32) {
    %c0_i32 = arith.constant 0 : i32
    %c0_i32_0 = arith.constant 0 : i32
    %c0_i32_1 = arith.constant 0 : i32
    return %c0_i32, %c0_i32_0 : i32, i32
  }
  func.func @transform_3(%arg0: i32) -> (i32, i32) {
    %c0_i32 = arith.constant 0 : i32
    %c0_i32_0 = arith.constant 0 : i32
    %c0_i32_1 = arith.constant 0 : i32
    return %c0_i32, %c0_i32_0 : i32, i32
  }
  func.func @transform_4(%arg0: i32) -> (i32, i32) {
    %c0_i32 = arith.constant 0 : i32
    %c0_i32_0 = arith.constant 0 : i32
    %c0_i32_1 = arith.constant 0 : i32
    return %c0_i32, %c0_i32_0 : i32, i32
  }
  func.func @transform_5(%arg0: i32) -> (i32, i32) {
    %c0_i32 = arith.constant 0 : i32
    %c0_i32_0 = arith.constant 0 : i32
    return %arg0, %c0_i32 : i32, i32
  }
}

</mosaic_0001>

<llo_original>
// kernel: tpu_custom_call.1
$region0: #{tpu_custom_call.1}
  #allocation0 [shape = 'u32[]', space=smem, size = 0x4, offset = 0x4, fixed_abs, tag = 'smem constant byte address 0x4 - core index']
  #allocation1 [shape = 'u32[144,128]{1,0:T(1,128)}', space=vmem, size = 0x12000, scoped, tag = 'internal scratch']
  %s0 = inlined_call_operand.vmem [shape: f32[32,32], index: 0, kind: input, shape index: {}]
  %s1 = inlined_call_operand.hbm [shape: f32[32,32], index: 1, kind: input, shape index: {}]
  %s2 = inlined_call_operand.vmem [shape: f32[1,32], index: 2, kind: input, shape index: {}]
  %s3 = inlined_call_operand.vmem [shape: f32[32,8], index: 3, kind: input, shape index: {}]
  %s4 = inlined_call_operand.vmem [shape: f32[1,8], index: 4, kind: input, shape index: {}]
  %s5 = inlined_call_operand.vmem [shape: f32[32,8], index: 5, kind: output, shape index: {}]
  %s6 = sld [smem:[#allocation0]]
  $region34: #{tpu_custom_call.1} parent=0
    _
  %s8 = ssub.s32 1, %s6
  %s9 = scalar_select 0, %s8, %s6
  $region1: #{tpu_custom_call.1} parent=0
    #allocation2 [shape = 'u8[16384]{0}', space=vmem, size = 0x4000, scoped, tag = 'input window, operand 1, single buffered']
    #allocation3 [shape = 's32[1]{0}', space=sflag, size = 0x4, scoped, tag = 'scoped memory for tpu_custom_call.1']
    %10 = vsyncpa [#allocation3], 0
    // Predicated region
    $region2: #{tpu_custom_call.1} parent=1 // pred_check
      _
    $region3: #{tpu_custom_call.1} parent=1 // pred_check_branch
      %12 = sbr.rel (0) target = $region5
    $region4: #{tpu_custom_call.1} parent=1 // pred_region
      _
    $region5: #{tpu_custom_call.1} parent=1 // pred_fallthru
      _
    // Predicated region
    $region6: #{tpu_custom_call.1} parent=1 // pred_check
      _
    $region7: #{tpu_custom_call.1} parent=1 // pred_check_branch
      %14 = sbr.rel (0) target = $region9
    $region8: #{tpu_custom_call.1} parent=1 // pred_region
      %s16 = ssub.s32 512, 512
      %17 = vsyncadd [#allocation3], %s16
      %s18 = sshll.u32 [#allocation2], 4
      %s19 = int_to_ptr.vmem [resolvable:$true] %s18
      %24 = dma.hbm_to_vmem [thread:$0]  %s1, 512, %s19, [#allocation3], 128, 128, 8
    $region9: #{tpu_custom_call.1} parent=1 // pred_fallthru
      _
    // Predicated region
    $region10: #{tpu_custom_call.1} parent=1 // pred_check
      _
    $region11: #{tpu_custom_call.1} parent=1 // pred_check_branch
      %26 = sbr.rel (0) target = $region13
    $region12: #{tpu_custom_call.1} parent=1 // pred_region
      _
    $region13: #{tpu_custom_call.1} parent=1 // pred_fallthru
      _
    // Predicated region
    $region14: #{tpu_custom_call.1} parent=1 // pred_check
      _
    $region15: #{tpu_custom_call.1} parent=1 // pred_check_branch
      %28 = sbr.rel (0) target = $region17
    $region16: #{tpu_custom_call.1} parent=1 // pred_region
      _
    $region17: #{tpu_custom_call.1} parent=1 // pred_fallthru
      _
    // Predicated region
    $region18: #{tpu_custom_call.1} parent=1 // pred_check
      _
    $region19: #{tpu_custom_call.1} parent=1 // pred_check_branch
      %30 = sbr.rel (0) target = $region21
    $region20: #{tpu_custom_call.1} parent=1 // pred_region
      _
    $region21: #{tpu_custom_call.1} parent=1 // pred_fallthru
      _
    // Predicated region
    $region22: #{tpu_custom_call.1} parent=1 // pred_check
      _
    $region23: #{tpu_custom_call.1} parent=1 // pred_check_branch
      %32 = sbr.rel (0) target = $region25
    $region24: #{tpu_custom_call.1} parent=1 // pred_region
      %33 = dma.done [#allocation3], 512
    $region25: #{tpu_custom_call.1} parent=1 // pred_fallthru
      _
    %v34 = vld [vmem:[%s0] sm:$0xff]
    %v35 = vld [vmem:[%s0 + $0x8] sm:$0xff]
    %v36 = vld [vmem:[%s0 + $0x10] sm:$0xff]
    %v37 = vld [vmem:[%s0 + $0x18] sm:$0xff]
    %v38 = vld [vmem:[#allocation2] sm:$0xff]
    %v39 = vld [vmem:[#allocation2 + $0x8] sm:$0xff]
    %v40 = vld [vmem:[#allocation2 + $0x10] sm:$0xff]
    %v41 = vld [vmem:[#allocation2 + $0x18] sm:$0xff]
    %v42 = vld [vmem:[%s2] sm:$0x1]
    %v44 = vlaneseq
    %v45 = vshrl.u32 %v44, 7
    %v46 = vsub.s32 0, %v45
    %v47 = vrot.slane %v42, %v46
    %vm49 = vcmask 261120
    %v51 = vsel %vm49, %v34, 0
    %v54 = vsel %vm49, %v35, 0
    %v57 = vsel %vm49, %v36, 0
    %v60 = vsel %vm49, %v37, 0
    %62 = vmatprep.subr.mxu0 0.0
    %63 = vmatpush1.msra.mxu0 0.0
    %64 = vmatprep.subr.mxu0 0.0
    %65 = vmatpush1.msra.mxu0 0.0
    %66 = vmatprep.subr.mxu0 0.0
    %67 = vmatpush1.msra.mxu0 0.0
    %68 = vmatprep.subr.mxu0 0.0
    %69 = vmatpush1.msra.mxu0 0.0
    %70 = vmatprep.subr.mxu0 0.0
    %71 = vmatpush1.msra.mxu0 0.0
    %72 = vmatprep.subr.mxu0 0.0
    %73 = vmatpush1.msra.mxu0 0.0
    %74 = vmatprep.subr.mxu0 0.0
    %75 = vmatpush1.msra.mxu0 0.0
    %76 = vmatprep.subr.mxu0 0.0
    %77 = vmatpush1.msra.mxu0 0.0
    %78 = vmatprep.subr.mxu0 0.0
    %79 = vmatpush1.msra.mxu0 0.0
    %80 = vmatprep.subr.mxu0 0.0
    %81 = vmatpush1.msra.mxu0 0.0
    %82 = vmatprep.subr.mxu0 0.0
    %83 = vmatpush1.msra.mxu0 0.0
    %84 = vmatprep.subr.mxu0 0.0
    %85 = vmatpush1.msra.mxu0 0.0
    %86 = vmatprep.subr.mxu0 0.0
    %87 = vmatpush1.msra.mxu0 %v41
    %88 = vmatprep.subr.mxu0 0.0
    %89 = vmatpush1.msra.mxu0 %v40
    %90 = vmatprep.subr.mxu0 0.0
    %91 = vmatpush1.msra.mxu0 %v39
    %92 = vmatprep.subr.mxu0 0.0
    %93 = vmatpush1.msra.mxu0 %v38
    %94 = vmatprep.subr.mxu0 0.0
    %95 = vmatpush2.msra.mxu0 0.0
    %96 = vmatprep.subr.mxu0 0.0
    %97 = vmatpush2.msra.mxu0 0.0
    %98 = vmatprep.subr.mxu0 0.0
    %99 = vmatpush2.msra.mxu0 0.0
    %100 = vmatprep.subr.mxu0 0.0
    %101 = vmatpush2.msra.mxu0 0.0
    %102 = vmatprep.subr.mxu0 0.0
    %103 = vmatpush2.msra.mxu0 0.0
    %104 = vmatprep.subr.mxu0 0.0
    %105 = vmatpush2.msra.mxu0 0.0
    %106 = vmatprep.subr.mxu0 0.0
    %107 = vmatpush2.msra.mxu0 0.0
    %108 = vmatprep.subr.mxu0 0.0
    %109 = vmatpush2.msra.mxu0 0.0
    %110 = vmatprep.subr.mxu0 0.0
    %111 = vmatpush2.msra.mxu0 0.0
    %112 = vmatprep.subr.mxu0 0.0
    %113 = vmatpush2.msra.mxu0 0.0
    %114 = vmatprep.subr.mxu0 0.0
    %115 = vmatpush2.msra.mxu0 0.0
    %116 = vmatprep.subr.mxu0 0.0
    %117 = vmatpush2.msra.mxu0 0.0
    %118 = vmatprep.subr.mxu0 0.0
    %119 = vmatpush2.msra.mxu0 0.0
    %120 = vmatprep.subr.mxu0 0.0
    %121 = vmatpush2.msra.mxu0 0.0
    %122 = vmatprep.subr.mxu0 0.0
    %123 = vmatpush2.msra.mxu0 0.0
    %124 = vmatprep.subr.mxu0 0.0
    %125 = vmatpush2.msra.mxu0 0.0
    %126 = vmatprep.mubr.f32.mxu0 0.0
    %127 = vmatmul.mubr.f32.gmra.mxu0 %v51
    %v128 = vpop.f32.mrf.mxu0
    %v129 = vadd.f32 %v47, %v128
    %v130 = vpop.f32.mrf.mxu0
    %131 = vmatprep.mubr.f32.mxu0 0.0
    %132 = vmatmul.mubr.f32.gmra.mxu0 %v54
    %v133 = vpop.f32.mrf.mxu0
    %v134 = vadd.f32 %v47, %v133
    %v135 = vpop.f32.mrf.mxu0
    %136 = vmatprep.mubr.f32.mxu0 0.0
    %137 = vmatmul.mubr.f32.gmra.mxu0 %v57
    %v138 = vpop.f32.mrf.mxu0
    %v139 = vadd.f32 %v47, %v138
    %v140 = vpop.f32.mrf.mxu0
    %141 = vmatprep.mubr.f32.mxu0 0.0
    %142 = vmatmul.mubr.f32.gmra.mxu0 %v60
    %v143 = vpop.f32.mrf.mxu0
    %v144 = vadd.f32 %v47, %v143
    %v145 = vpop.f32.mrf.mxu0
    %146 = vdwg.mxu0
    %v147 = vmax.f32 %v129, 0.0
    %v148 = vmax.f32 %v134, 0.0
    %v149 = vmax.f32 %v139, 0.0
    %v150 = vmax.f32 %v144, 0.0
    %v151 = vld [vmem:[%s3] sm:$0xff]
    %v152 = vld [vmem:[%s3 + $0x8] sm:$0xff]
    %v153 = vld [vmem:[%s3 + $0x10] sm:$0xff]
    %v154 = vld [vmem:[%s3 + $0x18] sm:$0xff]
    %v155 = vld [vmem:[%s4] sm:$0x1]
    %v157 = vlaneseq
    %v158 = vshrl.u32 %v157, 7
    %v159 = vsub.s32 0, %v158
    %v160 = vrot.slane %v155, %v159
    %v163 = vsel %vm49, %v147, 0
    %v166 = vsel %vm49, %v148, 0
    %v169 = vsel %vm49, %v149, 0
    %v172 = vsel %vm49, %v150, 0
    %174 = vmatprep.subr.mxu0 0.0
    %175 = vmatpush1.msra.mxu0 0.0
    %176 = vmatprep.subr.mxu0 0.0
    %177 = vmatpush1.msra.mxu0 0.0
    %178 = vmatprep.subr.mxu0 0.0
    %179 = vmatpush1.msra.mxu0 0.0
    %180 = vmatprep.subr.mxu0 0.0
    %181 = vmatpush1.msra.mxu0 0.0
    %182 = vmatprep.subr.mxu0 0.0
    %183 = vmatpush1.msra.mxu0 0.0
    %184 = vmatprep.subr.mxu0 0.0
    %185 = vmatpush1.msra.mxu0 0.0
    %186 = vmatprep.subr.mxu0 0.0
    %187 = vmatpush1.msra.mxu0 0.0
    %188 = vmatprep.subr.mxu0 0.0
    %189 = vmatpush1.msra.mxu0 0.0
    %190 = vmatprep.subr.mxu0 0.0
    %191 = vmatpush1.msra.mxu0 0.0
    %192 = vmatprep.subr.mxu0 0.0
    %193 = vmatpush1.msra.mxu0 0.0
    %194 = vmatprep.subr.mxu0 0.0
    %195 = vmatpush1.msra.mxu0 0.0
    %196 = vmatprep.subr.mxu0 0.0
    %197 = vmatpush1.msra.mxu0 0.0
    %198 = vmatprep.subr.mxu0 0.0
    %199 = vmatpush1.msra.mxu0 %v154
    %200 = vmatprep.subr.mxu0 0.0
    %201 = vmatpush1.msra.mxu0 %v153
    %202 = vmatprep.subr.mxu0 0.0
    %203 = vmatpush1.msra.mxu0 %v152
    %204 = vmatprep.subr.mxu0 0.0
    %205 = vmatpush1.msra.mxu0 %v151
    %206 = vmatprep.subr.mxu0 0.0
    %207 = vmatpush2.msra.mxu0 0.0
    %208 = vmatprep.subr.mxu0 0.0
    %209 = vmatpush2.msra.mxu0 0.0
    %210 = vmatprep.subr.mxu0 0.0
    %211 = vmatpush2.msra.mxu0 0.0
    %212 = vmatprep.subr.mxu0 0.0
    %213 = vmatpush2.msra.mxu0 0.0
    %214 = vmatprep.subr.mxu0 0.0
    %215 = vmatpush2.msra.mxu0 0.0
    %216 = vmatprep.subr.mxu0 0.0
    %217 = vmatpush2.msra.mxu0 0.0
    %218 = vmatprep.subr.mxu0 0.0
    %219 = vmatpush2.msra.mxu0 0.0
    %220 = vmatprep.subr.mxu0 0.0
    %221 = vmatpush2.msra.mxu0 0.0
    %222 = vmatprep.subr.mxu0 0.0
    %223 = vmatpush2.msra.mxu0 0.0
    %224 = vmatprep.subr.mxu0 0.0
    %225 = vmatpush2.msra.mxu0 0.0
    %226 = vmatprep.subr.mxu0 0.0
    %227 = vmatpush2.msra.mxu0 0.0
    %228 = vmatprep.subr.mxu0 0.0
    %229 = vmatpush2.msra.mxu0 0.0
    %230 = vmatprep.subr.mxu0 0.0
    %231 = vmatpush2.msra.mxu0 0.0
    %232 = vmatprep.subr.mxu0 0.0
    %233 = vmatpush2.msra.mxu0 0.0
    %234 = vmatprep.subr.mxu0 0.0
    %235 = vmatpush2.msra.mxu0 0.0
    %236 = vmatprep.subr.mxu0 0.0
    %237 = vmatpush2.msra.mxu0 0.0
    %238 = vmatprep.mubr.f32.mxu0 0.0
    %239 = vmatmul.mubr.f32.gmra.mxu0 %v163
    %v240 = vpop.f32.mrf.mxu0
    %v241 = vadd.f32 %v160, %v240
    %v242 = vpop.f32.mrf.mxu0
    %243 = vmatprep.mubr.f32.mxu0 0.0
    %244 = vmatmul.mubr.f32.gmra.mxu0 %v166
    %v245 = vpop.f32.mrf.mxu0
    %v246 = vadd.f32 %v160, %v245
    %v247 = vpop.f32.mrf.mxu0
    %248 = vmatprep.mubr.f32.mxu0 0.0
    %249 = vmatmul.mubr.f32.gmra.mxu0 %v169
    %v250 = vpop.f32.mrf.mxu0
    %v251 = vadd.f32 %v160, %v250
    %v252 = vpop.f32.mrf.mxu0
    %253 = vmatprep.mubr.f32.mxu0 0.0
    %254 = vmatmul.mubr.f32.gmra.mxu0 %v172
    %v255 = vpop.f32.mrf.mxu0
    %v256 = vadd.f32 %v160, %v255
    %v257 = vpop.f32.mrf.mxu0
    %258 = vdwg.mxu0
    %vm259 = vcmask 64512
    %v260 = vsel %vm259, %v241, -inf
    %261 = vmax.xlane.f32.xlu0 %v260
    %v262 = vpop.xlane.xlu0 %261
    %v263 = vsel %vm259, %v246, -inf
    %264 = vmax.xlane.f32.xlu0 %v263
    %v265 = vpop.xlane.xlu0 %264
    %v266 = vsel %vm259, %v251, -inf
    %267 = vmax.xlane.f32.xlu0 %v266
    %v268 = vpop.xlane.xlu0 %267
    %v269 = vsel %vm259, %v256, -inf
    %270 = vmax.xlane.f32.xlu0 %v269
    %v271 = vpop.xlane.xlu0 %270
    %v272 = vsub.f32 %v241, %v262
    %v273 = vsub.f32 %v246, %v265
    %v274 = vsub.f32 %v251, %v268
    %v275 = vsub.f32 %v256, %v271
    %v276 = vmul.f32 %v272, 1.442695
    %v277 = vpow.pop %v276
    %v278 = vmul.f32 %v273, 1.442695
    %v279 = vpow.pop %v278
    %v280 = vmul.f32 %v274, 1.442695
    %v281 = vpow.pop %v280
    %v282 = vmul.f32 %v275, 1.442695
    %v283 = vpow.pop %v282
    %v284 = vsel %vm259, %v277, 0.0
    %285 = vadd.xlane.f32.xlu0 %v284
    %v286 = vpop.xlane.xlu0 %285
    %v287 = vsel %vm259, %v279, 0.0
    %288 = vadd.xlane.f32.xlu0 %v287
    %v289 = vpop.xlane.xlu0 %288
    %v290 = vsel %vm259, %v281, 0.0
    %291 = vadd.xlane.f32.xlu0 %v290
    %v292 = vpop.xlane.xlu0 %291
    %v293 = vsel %vm259, %v283, 0.0
    %294 = vadd.xlane.f32.xlu0 %v293
    %v295 = vpop.xlane.xlu0 %294
    %v296 = vrcp.pop %v286
    %v297 = vrcp.pop %v289
    %v298 = vrcp.pop %v292
    %v299 = vrcp.pop %v295
    %v300 = vmul.f32 %v286, %v296
    %v301 = vmul.f32 %v289, %v297
    %v302 = vmul.f32 %v292, %v298
    %v303 = vmul.f32 %v295, %v299
    %v304 = vsub.f32 2.0, %v300
    %v305 = vsub.f32 2.0, %v301
    %v306 = vsub.f32 2.0, %v302
    %v307 = vsub.f32 2.0, %v303
    %v308 = vmul.f32 %v296, %v304
    %v309 = vmul.f32 %v297, %v305
    %v310 = vmul.f32 %v298, %v306
    %v311 = vmul.f32 %v299, %v307
    %v312 = vmul.f32 %v277, %v308
    %v313 = vmul.f32 %v279, %v309
    %v314 = vmul.f32 %v281, %v310
    %v315 = vmul.f32 %v283, %v311
    %316 = vst.msk [vmem:[%s5] sm:$0xff] %vm259, %v312
    %317 = vst.msk [vmem:[%s5 + $0x8] sm:$0xff] %vm259, %v313
    %318 = vst.msk [vmem:[%s5 + $0x10] sm:$0xff] %vm259, %v314
    %319 = vst.msk [vmem:[%s5 + $0x18] sm:$0xff] %vm259, %v315
    // Predicated region
    $region26: #{tpu_custom_call.1} parent=1 // pred_check
      _
    $region27: #{tpu_custom_call.1} parent=1 // pred_check_branch
      %321 = sbr.rel (0) target = $region29
    $region28: #{tpu_custom_call.1} parent=1 // pred_region
      _
    $region29: #{tpu_custom_call.1} parent=1 // pred_fallthru
      _
    // Predicated region
    $region30: #{tpu_custom_call.1} parent=1 // pred_check
      _
    $region31: #{tpu_custom_call.1} parent=1 // pred_check_branch
      %323 = sbr.rel (0) target = $region33
    $region32: #{tpu_custom_call.1} parent=1 // pred_region
      _
    $region33: #{tpu_custom_call.1} parent=1 // pred_fallthru
      _
    %324 = vsyncpa [#allocation3], 1

</llo_original>
